<compile_context>
chip_gen: v6e
topology: v6e:2x2x1
jax: 0.10.0
libtpu: 0.0.40
codegen_flags: <defaults>
</compile_context>

<pallas_src>
import jax
import jax.numpy as jnp
from jax.experimental import pallas as pl
from jax.experimental.pallas import tpu as pltpu

HIDDEN = 256


def _round_up(x, m):
    return ((x + m - 1) // m) * m


def _num_tensorcores():
    """Best-effort TensorCores-per-chip (v7x = 2, v5e/v6e = 1). Never raises."""
    try:
        info = pltpu.get_tpu_info()
        for attr in ("num_cores", "tensorcore_count", "num_tensorcores",
                     "cores_per_chip"):
            v = getattr(info, attr, None)
            if v:
                return max(1, int(v))
    except Exception:
        pass
    try:
        if "7" in jax.devices()[0].device_kind.lower():
            return 2
    except Exception:
        pass
    return 1


def _critic_kernel(
    sa_ref,           # (TM, S+A)  concatenated [state | action]
    tr_ref,           # (1, 256)   task_repr (leaky_relu already applied), f32
    w15_ref,          # (S+A, 512) fused [W1 | W5]
    b15_ref,          # (1, 512)   fused [b1 | b5]
    w2_ref, b2_ref,   # (256, 256), (1, 256)
    w3_ref, b3_ref,   # (256, 256), (1, 256)
    w4_ref, b4_ref,   # (1, 256),   (1, 1)     (W4 transposed -> lane reduce)
    w6_ref, b6_ref,   # (256, 256), (1, 256)
    w7_ref, b7_ref,   # (256, 256), (1, 256)
    w8_ref, b8_ref,   # (1, 256),   (1, 1)
    q_ref,            # (TM, 2)  -> [:, 0]=q1, [:, 1]=q2
):
    f32 = jnp.float32
    cdt = w2_ref.dtype  # matmul operand dtype (bf16 or f32)

    def mm(x, w_ref):
        return jnp.dot(x.astype(cdt), w_ref[...], preferred_element_type=f32)

    # Fused first layer of both Q heads: one K=(S+A) matmul -> (TM, 512).
    h15 = jnp.maximum(mm(sa_ref[...], w15_ref) + b15_ref[...], 0.0)
    h = h15[:, :HIDDEN]   # Q1 head (lane-tile-aligned split: 256 = 2 * 128)
    g = h15[:, HIDDEN:]   # Q2 head

    task = tr_ref[...]    # (1, 256) f32, broadcasts over (TM, 256)

    # ----- Q1 head -----
    h = jnp.maximum(mm(h, w2_ref) + b2_ref[...], 0.0)
    h = task * h
    h = jnp.maximum(mm(h, w3_ref) + b3_ref[...], 0.0)
    q1 = jnp.sum(h * w4_ref[...], axis=-1, keepdims=True) + b4_ref[...]

    # ----- Q2 head -----
    g = jnp.maximum(mm(g, w6_ref) + b6_ref[...], 0.0)
    g = task * g
    g = jnp.maximum(mm(g, w7_ref) + b7_ref[...], 0.0)
    q2 = jnp.sum(g * w8_ref[...], axis=-1, keepdims=True) + b8_ref[...]

    # Direct slice stores (no lane concat of two width-1 arrays).
    q_ref[:, 0:1] = q1.astype(q_ref.dtype)
    q_ref[:, 1:2] = q2.astype(q_ref.dtype)


def critic_forward(state, action, task_repr_vec, params, *, tm=1024, use_bf16=True):
    """Returns (q1, q2), each of shape (B, 1) float32."""
    B, S = state.shape
    A = action.shape[1]

    # Tiny (1, T) @ (T, 256) + leaky_relu, computed once outside the grid loop.
    t = task_repr_vec @ params["Wt"] + params["bt"]
    task_repr = jnp.where(t >= 0, t, 0.01 * t).astype(jnp.float32)

    # Single (B, S+A) input so the kernel does one K=(S+A) first-layer matmul.
    sa = jnp.concatenate([state, action], axis=1)

    wdt = jnp.bfloat16 if use_bf16 else jnp.float32
    w15 = jnp.concatenate([params["W1"], params["W5"]], axis=1).astype(wdt)  # (S+A, 512)
    b15 = jnp.concatenate([params["b1"], params["b5"]], axis=1)              # (1, 512)

    args = [
        sa, task_repr, w15, b15,
        params["W2"].astype(wdt), params["b2"],
        params["W3"].astype(wdt), params["b3"],
        params["W4"].T, params["b4"],          # (1, 256) f32, (1, 1)
        params["W6"].astype(wdt), params["b6"],
        params["W7"].astype(wdt), params["b7"],
        params["W8"].T, params["b8"],          # (1, 256) f32, (1, 1)
    ]

    # ---- batch tile selection --------------------------------------------
    #  * big tiles amortize the ~0.35 us fixed per-grid-step overhead,
    #  * on multi-TensorCore chips (v7x) cap TM so the grid has >= ncores
    #    steps and dimension_semantics=("parallel",) can shard across cores.
    b_pad = _round_up(B, 8)
    tm_eff = min(_round_up(max(tm, 8), 8), b_pad)
    ncores = _num_tensorcores()
    if ncores > 1:
        per_core = _round_up(pl.cdiv(B, ncores), 8)
        tm_eff = max(8, min(tm_eff, per_core))
    grid = (pl.cdiv(B, tm_eff),)

    def batch_spec(a):
        return pl.BlockSpec((tm_eff, a.shape[1]), lambda i: (i, 0))

    def const_spec(a):
        # Constant index map: weights/biases/task stay VMEM-resident across
        # grid steps (< 1 MiB total, so double-buffering them is cheap).
        return pl.BlockSpec(a.shape, lambda i: (0,) * a.ndim)

    in_specs = [batch_spec(sa)] + [const_spec(a) for a in args[1:]]

    # Advisory cost estimate for the XLA scheduler.
    macs_per_sample = (S + A) * 2 * HIDDEN + 4 * HIDDEN * HIDDEN + 2 * HIDDEN
    flops = int(2 * B * macs_per_sample)
    bytes_accessed = int(
        sum(int(a.size) * a.dtype.itemsize for a in args) + B * 2 * 4
    )

    q = pl.pallas_call(
        _critic_kernel,
        grid=grid,
        out_shape=jax.ShapeDtypeStruct((B, 2), jnp.float32),
        in_specs=in_specs,
        out_specs=pl.BlockSpec((tm_eff, 2), lambda i: (i, 0)),
        compiler_params=pltpu.CompilerParams(
            dimension_semantics=("parallel",),
            vmem_limit_bytes=32 << 20,
        ),
        cost_estimate=pl.CostEstimate(
            flops=flops, transcendentals=0, bytes_accessed=bytes_accessed
        ),
    )(*args)
    return q[:, 0:1], q[:, 1:2]


def _init_linear(key, fan_in, fan_out):
    """PyTorch nn.Linear default init: U(-1/sqrt(fan_in), 1/sqrt(fan_in))."""
    kw, kb = jax.random.split(key)
    bound = 1.0 / jnp.sqrt(jnp.float32(fan_in))
    W = jax.random.uniform(kw, (fan_in, fan_out), jnp.float32, -bound, bound)
    b = jax.random.uniform(kb, (1, fan_out), jnp.float32, -bound, bound)
    return W, b


def make_params(key, task_dim, state_dim, action_dim):
    keys = jax.random.split(key, 9)
    params = {}
    params["Wt"], params["bt"] = _init_linear(keys[0], task_dim, HIDDEN)
    params["W1"], params["b1"] = _init_linear(keys[1], state_dim + action_dim, HIDDEN)
    params["W2"], params["b2"] = _init_linear(keys[2], HIDDEN, HIDDEN)
    params["W3"], params["b3"] = _init_linear(keys[3], HIDDEN, HIDDEN)
    params["W4"], params["b4"] = _init_linear(keys[4], HIDDEN, 1)
    params["W5"], params["b5"] = _init_linear(keys[5], state_dim + action_dim, HIDDEN)
    params["W6"], params["b6"] = _init_linear(keys[6], HIDDEN, HIDDEN)
    params["W7"], params["b7"] = _init_linear(keys[7], HIDDEN, HIDDEN)
    params["W8"], params["b8"] = _init_linear(keys[8], HIDDEN, 1)
    return params


def _reference(state, action, task_repr_vec, params):
    """Pure-JAX f32 reference mirroring the PyTorch forward."""
    sa = jnp.concatenate([state, action], axis=1)
    t = task_repr_vec @ params["Wt"] + params["bt"]
    task_repr = jnp.where(t >= 0, t, 0.01 * t)
    relu = lambda x: jnp.maximum(x, 0.0)
    h = relu(sa @ params["W1"] + params["b1"])
    h = relu(h @ params["W2"] + params["b2"])
    h = task_repr * h
    h = relu(h @ params["W3"] + params["b3"])
    q1 = h @ params["W4"] + params["b4"]
    g = relu(sa @ params["W5"] + params["b5"])
    g = relu(g @ params["W6"] + params["b6"])
    g = task_repr * g
    g = relu(g @ params["W7"] + params["b7"])
    q2 = g @ params["W8"] + params["b8"]
    return q1, q2


if __name__ == "__main__":
    key = jax.random.PRNGKey(0)
    k_state, k_action, k_task, k_params = jax.random.split(key, 4)

    batch, state_dim, action_dim, task_dim = 2, 16, 4, 8

    state = jax.random.normal(k_state, (batch, state_dim), jnp.float32)
    action = jax.random.normal(k_action, (batch, action_dim), jnp.float32)
    task_repr_vec = jax.random.normal(k_task, (1, task_dim), jnp.float32)
    params = make_params(k_params, task_dim, state_dim, action_dim)

    r1, r2 = _reference(state, action, task_repr_vec, params)

    # f32 matmul path: tight numerical check against the reference.
    q1, q2 = critic_forward(state, action, task_repr_vec, params, use_bf16=False)
    jax.block_until_ready((q1, q2))
    assert q1.shape == (batch, 1) and q2.shape == (batch, 1)
    assert jnp.allclose(q1, r1, atol=1e-4, rtol=1e-4)
    assert jnp.allclose(q2, r2, atol=1e-4, rtol=1e-4)

    # bf16 MXU path (default): loose tolerance (bf16 mantissa in hidden layers).
    q1b, q2b = critic_forward(state, action, task_repr_vec, params)
    jax.block_until_ready((q1b, q2b))
    assert jnp.allclose(q1b, r1, atol=1e-1, rtol=1e-1)
    assert jnp.allclose(q2b, r2, atol=1e-1, rtol=1e-1)

    # Larger batch with a small tile to exercise the batch grid + partial tile.
    B2 = 40
    ks2, ka2 = jax.random.split(jax.random.PRNGKey(1))
    state2 = jax.random.normal(ks2, (B2, state_dim), jnp.float32)
    action2 = jax.random.normal(ka2, (B2, action_dim), jnp.float32)
    r1b, r2b = _reference(state2, action2, task_repr_vec, params)
    p1, p2 = critic_forward(state2, action2, task_repr_vec, params, tm=16, use_bf16=False)
    jax.block_until_ready((p1, p2))
    assert p1.shape == (B2, 1) and p2.shape == (B2, 1)
    assert jnp.allclose(p1, r1b, atol=1e-4, rtol=1e-4)
    assert jnp.allclose(p2, r2b, atol=1e-4, rtol=1e-4)

    print("KERNEL_OK")
</pallas_src>

<mosaic_0001>
module attributes {stable_mosaic.version = 11 : i64} {
  func.func @_critic_kernel(%arg0: i32, %arg1: memref<8x20xf32, #tpu.memory_space<vmem>>, %arg2: memref<1x256xf32, #tpu.memory_space<vmem>>, %arg3: memref<20x512xf32, #tpu.memory_space<vmem>>, %arg4: memref<1x512xf32, #tpu.memory_space<vmem>>, %arg5: memref<256x256xf32, #tpu.memory_space<vmem>>, %arg6: memref<1x256xf32, #tpu.memory_space<vmem>>, %arg7: memref<256x256xf32, #tpu.memory_space<vmem>>, %arg8: memref<1x256xf32, #tpu.memory_space<vmem>>, %arg9: memref<1x256xf32, #tpu.memory_space<vmem>>, %arg10: memref<1x1xf32, #tpu.memory_space<vmem>>, %arg11: memref<256x256xf32, #tpu.memory_space<vmem>>, %arg12: memref<1x256xf32, #tpu.memory_space<vmem>>, %arg13: memref<256x256xf32, #tpu.memory_space<vmem>>, %arg14: memref<1x256xf32, #tpu.memory_space<vmem>>, %arg15: memref<1x256xf32, #tpu.memory_space<vmem>>, %arg16: memref<1x1xf32, #tpu.memory_space<vmem>>, %arg17: memref<8x2xf32, #tpu.memory_space<vmem>>) attributes {dimension_semantics = [#tpu.dimension_semantics<parallel>], iteration_bounds = array<i64: 1>, scalar_prefetch = 0 : i64, scratch_operands = 0 : i64, tpu.core_type = #tpu.core_type<tc>, window_params = [{transform_indices = @transform_0, window_bounds = array<i64: 8, 20>}, {pipeline_mode = #tpu.pipeline_mode<synchronous>, transform_indices = @transform_1, window_bounds = array<i64: 1, 256>}, {pipeline_mode = #tpu.pipeline_mode<synchronous>, transform_indices = @transform_2, window_bounds = array<i64: 20, 512>}, {pipeline_mode = #tpu.pipeline_mode<synchronous>, transform_indices = @transform_3, window_bounds = array<i64: 1, 512>}, {pipeline_mode = #tpu.pipeline_mode<synchronous>, transform_indices = @transform_4, window_bounds = array<i64: 256, 256>}, {pipeline_mode = #tpu.pipeline_mode<synchronous>, transform_indices = @transform_5, window_bounds = array<i64: 1, 256>}, {pipeline_mode = #tpu.pipeline_mode<synchronous>, transform_indices = @transform_6, window_bounds = array<i64: 256, 256>}, {pipeline_mode = #tpu.pipeline_mode<synchronous>, transform_indices = @transform_7, window_bounds = array<i64: 1, 256>}, {pipeline_mode = #tpu.pipeline_mode<synchronous>, transform_indices = @transform_8, window_bounds = array<i64: 1, 256>}, {pipeline_mode = #tpu.pipeline_mode<synchronous>, transform_indices = @transform_9, window_bounds = array<i64: 1, 1>}, {pipeline_mode = #tpu.pipeline_mode<synchronous>, transform_indices = @transform_10, window_bounds = array<i64: 256, 256>}, {pipeline_mode = #tpu.pipeline_mode<synchronous>, transform_indices = @transform_11, window_bounds = array<i64: 1, 256>}, {pipeline_mode = #tpu.pipeline_mode<synchronous>, transform_indices = @transform_12, window_bounds = array<i64: 256, 256>}, {pipeline_mode = #tpu.pipeline_mode<synchronous>, transform_indices = @transform_13, window_bounds = array<i64: 1, 256>}, {pipeline_mode = #tpu.pipeline_mode<synchronous>, transform_indices = @transform_14, window_bounds = array<i64: 1, 256>}, {pipeline_mode = #tpu.pipeline_mode<synchronous>, transform_indices = @transform_15, window_bounds = array<i64: 1, 1>}, {transform_indices = @transform_16, window_bounds = array<i64: 8, 2>}]} {
    %c0 = arith.constant 0 : index
    %c0_0 = arith.constant 0 : index
    %0 = vector.load %arg1[%c0, %c0_0] : memref<8x20xf32, #tpu.memory_space<vmem>>, vector<8x20xf32>
    %c0_1 = arith.constant 0 : index
    %c0_2 = arith.constant 0 : index
    %1 = vector.load %arg3[%c0_1, %c0_2] : memref<20x512xf32, #tpu.memory_space<vmem>>, vector<20x512xf32>
    %cst = arith.constant dense<0.000000e+00> : vector<8x512xf32>
    %2 = tpu.matmul %0, %1, %cst {dimension_numbers = #tpu.dot_dimension_numbers<[1], [0], [0], [1], [0, 0, 1, 1], [], []>} : vector<8x20xf32>, vector<20x512xf32>, vector<8x512xf32> -> vector<8x512xf32>
    %c0_3 = arith.constant 0 : index
    %c0_4 = arith.constant 0 : index
    %3 = vector.load %arg4[%c0_3, %c0_4] : memref<1x512xf32, #tpu.memory_space<vmem>>, vector<1x512xf32>
    %4 = vector.broadcast %3 : vector<1x512xf32> to vector<8x512xf32>
    %5 = arith.addf %2, %4 : vector<8x512xf32>
    %cst_5 = arith.constant 0.000000e+00 : f32
    %6 = vector.broadcast %cst_5 : f32 to vector<8x512xf32>
    %7 = arith.maximumf %5, %6 : vector<8x512xf32>
    %8 = vector.extract_strided_slice %7 {offsets = [0, 0], sizes = [8, 256], strides = [1, 1]} : vector<8x512xf32> to vector<8x256xf32>
    %9 = vector.extract_strided_slice %7 {offsets = [0, 256], sizes = [8, 256], strides = [1, 1]} : vector<8x512xf32> to vector<8x256xf32>
    %c0_6 = arith.constant 0 : index
    %c0_7 = arith.constant 0 : index
    %10 = vector.load %arg2[%c0_6, %c0_7] : memref<1x256xf32, #tpu.memory_space<vmem>>, vector<1x256xf32>
    %c0_8 = arith.constant 0 : index
    %c0_9 = arith.constant 0 : index
    %11 = vector.load %arg5[%c0_8, %c0_9] : memref<256x256xf32, #tpu.memory_space<vmem>>, vector<256x256xf32>
    %cst_10 = arith.constant dense<0.000000e+00> : vector<8x256xf32>
    %12 = tpu.matmul %8, %11, %cst_10 {dimension_numbers = #tpu.dot_dimension_numbers<[1], [0], [0], [1], [0, 0, 1, 1], [], []>} : vector<8x256xf32>, vector<256x256xf32>, vector<8x256xf32> -> vector<8x256xf32>
    %c0_11 = arith.constant 0 : index
    %c0_12 = arith.constant 0 : index
    %13 = vector.load %arg6[%c0_11, %c0_12] : memref<1x256xf32, #tpu.memory_space<vmem>>, vector<1x256xf32>
    %14 = vector.broadcast %13 : vector<1x256xf32> to vector<8x256xf32>
    %15 = arith.addf %12, %14 : vector<8x256xf32>
    %cst_13 = arith.constant 0.000000e+00 : f32
    %16 = vector.broadcast %cst_13 : f32 to vector<8x256xf32>
    %17 = arith.maximumf %15, %16 : vector<8x256xf32>
    %18 = vector.broadcast %10 : vector<1x256xf32> to vector<8x256xf32>
    %19 = arith.mulf %18, %17 : vector<8x256xf32>
    %c0_14 = arith.constant 0 : index
    %c0_15 = arith.constant 0 : index
    %20 = vector.load %arg7[%c0_14, %c0_15] : memref<256x256xf32, #tpu.memory_space<vmem>>, vector<256x256xf32>
    %cst_16 = arith.constant dense<0.000000e+00> : vector<8x256xf32>
    %21 = tpu.matmul %19, %20, %cst_16 {dimension_numbers = #tpu.dot_dimension_numbers<[1], [0], [0], [1], [0, 0, 1, 1], [], []>} : vector<8x256xf32>, vector<256x256xf32>, vector<8x256xf32> -> vector<8x256xf32>
    %c0_17 = arith.constant 0 : index
    %c0_18 = arith.constant 0 : index
    %22 = vector.load %arg8[%c0_17, %c0_18] : memref<1x256xf32, #tpu.memory_space<vmem>>, vector<1x256xf32>
    %23 = vector.broadcast %22 : vector<1x256xf32> to vector<8x256xf32>
    %24 = arith.addf %21, %23 : vector<8x256xf32>
    %cst_19 = arith.constant 0.000000e+00 : f32
    %25 = vector.broadcast %cst_19 : f32 to vector<8x256xf32>
    %26 = arith.maximumf %24, %25 : vector<8x256xf32>
    %c0_20 = arith.constant 0 : index
    %c0_21 = arith.constant 0 : index
    %27 = vector.load %arg9[%c0_20, %c0_21] : memref<1x256xf32, #tpu.memory_space<vmem>>, vector<1x256xf32>
    %28 = vector.broadcast %27 : vector<1x256xf32> to vector<8x256xf32>
    %29 = arith.mulf %26, %28 : vector<8x256xf32>
    %cst_22 = arith.constant dense<0.000000e+00> : vector<8xf32>
    %30 = vector.multi_reduction <add>, %29, %cst_22 [1] : vector<8x256xf32> to vector<8xf32>
    %31 = vector.shape_cast %30 : vector<8xf32> to vector<8x1xf32>
    %c0_23 = arith.constant 0 : index
    %c0_24 = arith.constant 0 : index
    %32 = vector.load %arg10[%c0_23, %c0_24] : memref<1x1xf32, #tpu.memory_space<vmem>>, vector<1x1xf32>
    %33 = vector.broadcast %32 : vector<1x1xf32> to vector<8x1xf32>
    %34 = arith.addf %31, %33 : vector<8x1xf32>
    %c0_25 = arith.constant 0 : index
    %c0_26 = arith.constant 0 : index
    %35 = vector.load %arg11[%c0_25, %c0_26] : memref<256x256xf32, #tpu.memory_space<vmem>>, vector<256x256xf32>
    %cst_27 = arith.constant dense<0.000000e+00> : vector<8x256xf32>
    %36 = tpu.matmul %9, %35, %cst_27 {dimension_numbers = #tpu.dot_dimension_numbers<[1], [0], [0], [1], [0, 0, 1, 1], [], []>} : vector<8x256xf32>, vector<256x256xf32>, vector<8x256xf32> -> vector<8x256xf32>
    %c0_28 = arith.constant 0 : index
    %c0_29 = arith.constant 0 : index
    %37 = vector.load %arg12[%c0_28, %c0_29] : memref<1x256xf32, #tpu.memory_space<vmem>>, vector<1x256xf32>
    %38 = vector.broadcast %37 : vector<1x256xf32> to vector<8x256xf32>
    %39 = arith.addf %36, %38 : vector<8x256xf32>
    %cst_30 = arith.constant 0.000000e+00 : f32
    %40 = vector.broadcast %cst_30 : f32 to vector<8x256xf32>
    %41 = arith.maximumf %39, %40 : vector<8x256xf32>
    %42 = vector.broadcast %10 : vector<1x256xf32> to vector<8x256xf32>
    %43 = arith.mulf %42, %41 : vector<8x256xf32>
    %c0_31 = arith.constant 0 : index
    %c0_32 = arith.constant 0 : index
    %44 = vector.load %arg13[%c0_31, %c0_32] : memref<256x256xf32, #tpu.memory_space<vmem>>, vector<256x256xf32>
    %cst_33 = arith.constant dense<0.000000e+00> : vector<8x256xf32>
    %45 = tpu.matmul %43, %44, %cst_33 {dimension_numbers = #tpu.dot_dimension_numbers<[1], [0], [0], [1], [0, 0, 1, 1], [], []>} : vector<8x256xf32>, vector<256x256xf32>, vector<8x256xf32> -> vector<8x256xf32>
    %c0_34 = arith.constant 0 : index
    %c0_35 = arith.constant 0 : index
    %46 = vector.load %arg14[%c0_34, %c0_35] : memref<1x256xf32, #tpu.memory_space<vmem>>, vector<1x256xf32>
    %47 = vector.broadcast %46 : vector<1x256xf32> to vector<8x256xf32>
    %48 = arith.addf %45, %47 : vector<8x256xf32>
    %cst_36 = arith.constant 0.000000e+00 : f32
    %49 = vector.broadcast %cst_36 : f32 to vector<8x256xf32>
    %50 = arith.maximumf %48, %49 : vector<8x256xf32>
    %c0_37 = arith.constant 0 : index
    %c0_38 = arith.constant 0 : index
    %51 = vector.load %arg15[%c0_37, %c0_38] : memref<1x256xf32, #tpu.memory_space<vmem>>, vector<1x256xf32>
    %52 = vector.broadcast %51 : vector<1x256xf32> to vector<8x256xf32>
    %53 = arith.mulf %50, %52 : vector<8x256xf32>
    %cst_39 = arith.constant dense<0.000000e+00> : vector<8xf32>
    %54 = vector.multi_reduction <add>, %53, %cst_39 [1] : vector<8x256xf32> to vector<8xf32>
    %55 = vector.shape_cast %54 : vector<8xf32> to vector<8x1xf32>
    %c0_40 = arith.constant 0 : index
    %c0_41 = arith.constant 0 : index
    %56 = vector.load %arg16[%c0_40, %c0_41] : memref<1x1xf32, #tpu.memory_space<vmem>>, vector<1x1xf32>
    %57 = vector.broadcast %56 : vector<1x1xf32> to vector<8x1xf32>
    %58 = arith.addf %55, %57 : vector<8x1xf32>
    %c0_42 = arith.constant 0 : index
    %c0_43 = arith.constant 0 : index
    %59 = vector.load %arg17[%c0_42, %c0_43] : memref<8x2xf32, #tpu.memory_space<vmem>>, vector<8x1xf32>
    tpu.vector_store %arg17[%c0_42, %c0_43], %34 {strides = array<i32>} : memref<8x2xf32, #tpu.memory_space<vmem>>, vector<8x1xf32>,
    %c0_44 = arith.constant 0 : index
    %c1 = arith.constant 1 : index
    %60 = vector.load %arg17[%c0_44, %c1] : memref<8x2xf32, #tpu.memory_space<vmem>>, vector<8x1xf32>
    tpu.vector_store %arg17[%c0_44, %c1], %58 {strides = array<i32>} : memref<8x2xf32, #tpu.memory_space<vmem>>, vector<8x1xf32>,
    return
  }
  func.func @transform_0(%arg0: i32) -> (i32, i32) {
    %c0_i32 = arith.constant 0 : i32
    %c0_i32_0 = arith.constant 0 : i32
    return %arg0, %c0_i32 : i32, i32
  }
  func.func @transform_1(%arg0: i32) -> (i32, i32) {
    %c0_i32 = arith.constant 0 : i32
    %c0_i32_0 = arith.constant 0 : i32
    %c0_i32_1 = arith.constant 0 : i32
    return %c0_i32, %c0_i32_0 : i32, i32
  }
  func.func @transform_2(%arg0: i32) -> (i32, i32) {
    %c0_i32 = arith.constant 0 : i32
    %c0_i32_0 = arith.constant 0 : i32
    %c0_i32_1 = arith.constant 0 : i32
    return %c0_i32, %c0_i32_0 : i32, i32
  }
  func.func @transform_3(%arg0: i32) -> (i32, i32) {
    %c0_i32 = arith.constant 0 : i32
    %c0_i32_0 = arith.constant 0 : i32
    %c0_i32_1 = arith.constant 0 : i32
    return %c0_i32, %c0_i32_0 : i32, i32
  }
  func.func @transform_4(%arg0: i32) -> (i32, i32) {
    %c0_i32 = arith.constant 0 : i32
    %c0_i32_0 = arith.constant 0 : i32
    %c0_i32_1 = arith.constant 0 : i32
    return %c0_i32, %c0_i32_0 : i32, i32
  }
  func.func @transform_5(%arg0: i32) -> (i32, i32) {
    %c0_i32 = arith.constant 0 : i32
    %c0_i32_0 = arith.constant 0 : i32
    %c0_i32_1 = arith.constant 0 : i32
    return %c0_i32, %c0_i32_0 : i32, i32
  }
  func.func @transform_6(%arg0: i32) -> (i32, i32) {
    %c0_i32 = arith.constant 0 : i32
    %c0_i32_0 = arith.constant 0 : i32
    %c0_i32_1 = arith.constant 0 : i32
    return %c0_i32, %c0_i32_0 : i32, i32
  }
  func.func @transform_7(%arg0: i32) -> (i32, i32) {
    %c0_i32 = arith.constant 0 : i32
    %c0_i32_0 = arith.constant 0 : i32
    %c0_i32_1 = arith.constant 0 : i32
    return %c0_i32, %c0_i32_0 : i32, i32
  }
  func.func @transform_8(%arg0: i32) -> (i32, i32) {
    %c0_i32 = arith.constant 0 : i32
    %c0_i32_0 = arith.constant 0 : i32
    %c0_i32_1 = arith.constant 0 : i32
    return %c0_i32, %c0_i32_0 : i32, i32
  }
  func.func @transform_9(%arg0: i32) -> (i32, i32) {
    %c0_i32 = arith.constant 0 : i32
    %c0_i32_0 = arith.constant 0 : i32
    %c0_i32_1 = arith.constant 0 : i32
    return %c0_i32, %c0_i32_0 : i32, i32
  }
  func.func @transform_10(%arg0: i32) -> (i32, i32) {
    %c0_i32 = arith.constant 0 : i32
    %c0_i32_0 = arith.constant 0 : i32
    %c0_i32_1 = arith.constant 0 : i32
    return %c0_i32, %c0_i32_0 : i32, i32
  }
  func.func @transform_11(%arg0: i32) -> (i32, i32) {
    %c0_i32 = arith.constant 0 : i32
    %c0_i32_0 = arith.constant 0 : i32
    %c0_i32_1 = arith.constant 0 : i32
    return %c0_i32, %c0_i32_0 : i32, i32
  }
  func.func @transform_12(%arg0: i32) -> (i32, i32) {
    %c0_i32 = arith.constant 0 : i32
    %c0_i32_0 = arith.constant 0 : i32
    %c0_i32_1 = arith.constant 0 : i32
    return %c0_i32, %c0_i32_0 : i32, i32
  }
  func.func @transform_13(%arg0: i32) -> (i32, i32) {
    %c0_i32 = arith.constant 0 : i32
    %c0_i32_0 = arith.constant 0 : i32
    %c0_i32_1 = arith.constant 0 : i32
    return %c0_i32, %c0_i32_0 : i32, i32
  }
  func.func @transform_14(%arg0: i32) -> (i32, i32) {
    %c0_i32 = arith.constant 0 : i32
    %c0_i32_0 = arith.constant 0 : i32
    %c0_i32_1 = arith.constant 0 : i32
    return %c0_i32, %c0_i32_0 : i32, i32
  }
  func.func @transform_15(%arg0: i32) -> (i32, i32) {
    %c0_i32 = arith.constant 0 : i32
    %c0_i32_0 = arith.constant 0 : i32
    %c0_i32_1 = arith.constant 0 : i32
    return %c0_i32, %c0_i32_0 : i32, i32
  }
  func.func @transform_16(%arg0: i32) -> (i32, i32) {
    %c0_i32 = arith.constant 0 : i32
    %c0_i32_0 = arith.constant 0 : i32
    return %arg0, %c0_i32 : i32, i32
  }
}

</mosaic_0001>

<llo_original>
// kernel: tpu_custom_call.1
$region0: #{tpu_custom_call.1}
  #allocation0 [shape = 'u32[]', space=smem, size = 0x4, offset = 0x4, fixed_abs, tag = 'smem constant byte address 0x4 - core index']
  #allocation1 [shape = 'u32[144,128]{1,0:T(1,128)}', space=vmem, size = 0x12000, scoped, tag = 'internal scratch']
  #allocation2 [shape = 'f32[1,1]{1,0:T(1,128)S(1)}', space=vmem, size = 0x200, scoped, tag = 'scoped memory for tpu_custom_call.1']
  #allocation3 [shape = 'f32[1,1]{1,0:T(1,128)S(1)}', space=vmem, size = 0x200, scoped, tag = 'scoped memory for tpu_custom_call.1']
  %s0 = inlined_call_operand.vmem [shape: f32[2,20], index: 0, kind: input, shape index: {}]
  %s1 = inlined_call_operand.hbm [shape: f32[1,256], index: 1, kind: input, shape index: {}]
  %s2 = inlined_call_operand.hbm [shape: f32[20,512], index: 2, kind: input, shape index: {}]
  %s3 = inlined_call_operand.vmem [shape: f32[1,512], index: 3, kind: input, shape index: {}]
  %s4 = inlined_call_operand.hbm [shape: f32[256,256], index: 4, kind: input, shape index: {}]
  %s5 = inlined_call_operand.vmem [shape: f32[1,256], index: 5, kind: input, shape index: {}]
  %s6 = inlined_call_operand.hbm [shape: f32[256,256], index: 6, kind: input, shape index: {}]
  %s7 = inlined_call_operand.vmem [shape: f32[1,256], index: 7, kind: input, shape index: {}]
  %s8 = inlined_call_operand.vmem [shape: f32[1,256], index: 8, kind: input, shape index: {}]
  %s9 = inlined_call_operand.<no memory space> [shape: f32[1,1], index: 9, kind: input, shape index: {}]
  %s10 = inlined_call_operand.hbm [shape: f32[256,256], index: 10, kind: input, shape index: {}]
  %s11 = inlined_call_operand.vmem [shape: f32[1,256], index: 11, kind: input, shape index: {}]
  %s12 = inlined_call_operand.hbm [shape: f32[256,256], index: 12, kind: input, shape index: {}]
  %s13 = inlined_call_operand.vmem [shape: f32[1,256], index: 13, kind: input, shape index: {}]
  %s14 = inlined_call_operand.vmem [shape: f32[1,256], index: 14, kind: input, shape index: {}]
  %s15 = inlined_call_operand.<no memory space> [shape: f32[1,1], index: 15, kind: input, shape index: {}]
  %s16 = inlined_call_operand.hbm [shape: f32[2,2], index: 16, kind: output, shape index: {}]
  %s17 = sld [smem:[#allocation0]]
  $region98: #{tpu_custom_call.1} parent=0
    _
  %s19 = ssub.s32 1, %s17
  %s20 = scalar_select 0, %s19, %s17
  %v21 = vstv %s9
  %22 = vst [vmem:[#allocation2] sm:$0x1] %v21
  %v23 = vstv %s15
  %24 = vst [vmem:[#allocation3] sm:$0x1] %v23
  $region1: #{tpu_custom_call.1} parent=0
    #allocation4 [shape = 'u8[1024]{0}', space=vmem, size = 0x400, scoped, tag = 'input window, operand 1, single buffered']
    #allocation5 [shape = 's32[1]{0}', space=sflag, size = 0x4, scoped, tag = 'scoped memory for tpu_custom_call.1']
    #allocation6 [shape = 's32[1]{0}', space=sflag, size = 0x4, scoped, tag = 'scoped memory for tpu_custom_call.1']
    #allocation7 [shape = 'u8[49152]{0}', space=vmem, size = 0xc000, scoped, tag = 'input window, operand 2, single buffered']
    #allocation8 [shape = 's32[1]{0}', space=sflag, size = 0x4, scoped, tag = 'scoped memory for tpu_custom_call.1']
    #allocation9 [shape = 'u8[262144]{0}', space=vmem, size = 0x40000, scoped, tag = 'input window, operand 4, single buffered']
    #allocation10 [shape = 'u8[262144]{0}', space=vmem, size = 0x40000, scoped, tag = 'input window, operand 6, single buffered']
    #allocation11 [shape = 's32[1]{0}', space=sflag, size = 0x4, scoped, tag = 'scoped memory for tpu_custom_call.1']
    #allocation12 [shape = 'u8[262144]{0}', space=vmem, size = 0x40000, scoped, tag = 'input window, operand 10, single buffered']
    #allocation13 [shape = 'u8[262144]{0}', space=vmem, size = 0x40000, scoped, tag = 'input window, operand 12, single buffered']
    #allocation14 [shape = 's32[1]{0}', space=sflag, size = 0x4, scoped, tag = 'scoped memory for tpu_custom_call.1']
    #allocation15 [shape = 'u8[4096]{0}', space=vmem, size = 0x1000, scoped, tag = 'output window, operand 0, single buffered']
    %25 = vsyncpa [#allocation5], 0
    %26 = vsyncpa [#allocation8], 0
    %27 = vsyncpa [#allocation11], 0
    %28 = vsyncpa [#allocation14], 0
    %29 = vsyncpa [#allocation6], 0
    // Predicated region
    $region2: #{tpu_custom_call.1} parent=1 // pred_check
      _
    $region3: #{tpu_custom_call.1} parent=1 // pred_check_branch
      %31 = sbr.rel (0) target = $region5
    $region4: #{tpu_custom_call.1} parent=1 // pred_region
      _
    $region5: #{tpu_custom_call.1} parent=1 // pred_fallthru
      _
    // Predicated region
    $region6: #{tpu_custom_call.1} parent=1 // pred_check
      _
    $region7: #{tpu_custom_call.1} parent=1 // pred_check_branch
      %33 = sbr.rel (0) target = $region9
    $region8: #{tpu_custom_call.1} parent=1 // pred_region
      %s35 = ssub.s32 32, 32
      %36 = vsyncadd [#allocation5], %s35
      %s38 = sshll.u32 [#allocation4], 4
      %s39 = int_to_ptr.vmem [resolvable:$true] %s38
      %41 = dma.hbm_to_vmem [thread:$0]  %s1, 32, %s39, [#allocation5]
    $region9: #{tpu_custom_call.1} parent=1 // pred_fallthru
      _
    // Predicated region
    $region10: #{tpu_custom_call.1} parent=1 // pred_check
      _
    $region11: #{tpu_custom_call.1} parent=1 // pred_check_branch
      %43 = sbr.rel (0) target = $region13
    $region12: #{tpu_custom_call.1} parent=1 // pred_region
      %s45 = ssub.s32 1536, 1536
      %46 = vsyncadd [#allocation8], %s45
      %s47 = sshll.u32 [#allocation7], 4
      %s48 = int_to_ptr.vmem [resolvable:$true] %s47
      %53 = dma.hbm_to_vmem [thread:$0]  %s2, 1536, %s48, [#allocation8], 512, 512, 32
    $region13: #{tpu_custom_call.1} parent=1 // pred_fallthru
      _
    // Predicated region
    $region14: #{tpu_custom_call.1} parent=1 // pred_check
      _
    $region15: #{tpu_custom_call.1} parent=1 // pred_check_branch
      %55 = sbr.rel (0) target = $region17
    $region16: #{tpu_custom_call.1} parent=1 // pred_region
      _
    $region17: #{tpu_custom_call.1} parent=1 // pred_fallthru
      _
    // Predicated region
    $region18: #{tpu_custom_call.1} parent=1 // pred_check
      _
    $region19: #{tpu_custom_call.1} parent=1 // pred_check_branch
      %57 = sbr.rel (0) target = $region21
    $region20: #{tpu_custom_call.1} parent=1 // pred_region
      %s59 = ssub.s32 8192, 8192
      %60 = vsyncadd [#allocation8], %s59
      %s61 = sshll.u32 [#allocation9], 4
      %s62 = int_to_ptr.vmem [resolvable:$true] %s61
      %67 = dma.hbm_to_vmem [thread:$0]  %s4, 8192, %s62, [#allocation8], 256, 256, 16
    $region21: #{tpu_custom_call.1} parent=1 // pred_fallthru
      _
    // Predicated region
    $region22: #{tpu_custom_call.1} parent=1 // pred_check
      _
    $region23: #{tpu_custom_call.1} parent=1 // pred_check_branch
      %69 = sbr.rel (0) target = $region25
    $region24: #{tpu_custom_call.1} parent=1 // pred_region
      _
    $region25: #{tpu_custom_call.1} parent=1 // pred_fallthru
      _
    // Predicated region
    $region26: #{tpu_custom_call.1} parent=1 // pred_check
      _
    $region27: #{tpu_custom_call.1} parent=1 // pred_check_branch
      %71 = sbr.rel (0) target = $region29
    $region28: #{tpu_custom_call.1} parent=1 // pred_region
      %s73 = ssub.s32 8192, 8192
      %74 = vsyncadd [#allocation11], %s73
      %s75 = sshll.u32 [#allocation10], 4
      %s76 = int_to_ptr.vmem [resolvable:$true] %s75
      %81 = dma.hbm_to_vmem [thread:$0]  %s6, 8192, %s76, [#allocation11], 256, 256, 16
    $region29: #{tpu_custom_call.1} parent=1 // pred_fallthru
      _
    // Predicated region
    $region30: #{tpu_custom_call.1} parent=1 // pred_check
      _
    $region31: #{tpu_custom_call.1} parent=1 // pred_check_branch
      %83 = sbr.rel (0) target = $region33
    $region32: #{tpu_custom_call.1} parent=1 // pred_region
      _
    $region33: #{tpu_custom_call.1} parent=1 // pred_fallthru
      _
    // Predicated region
    $region34: #{tpu_custom_call.1} parent=1 // pred_check
      _
    $region35: #{tpu_custom_call.1} parent=1 // pred_check_branch
      %85 = sbr.rel (0) target = $region37
    $region36: #{tpu_custom_call.1} parent=1 // pred_region
      _
    $region37: #{tpu_custom_call.1} parent=1 // pred_fallthru
      _
    // Predicated region
    $region38: #{tpu_custom_call.1} parent=1 // pred_check
      _
    $region39: #{tpu_custom_call.1} parent=1 // pred_check_branch
      %87 = sbr.rel (0) target = $region41
    $region40: #{tpu_custom_call.1} parent=1 // pred_region
      _
    $region41: #{tpu_custom_call.1} parent=1 // pred_fallthru
      _
    // Predicated region
    $region42: #{tpu_custom_call.1} parent=1 // pred_check
      _
    $region43: #{tpu_custom_call.1} parent=1 // pred_check_branch
      %89 = sbr.rel (0) target = $region45
    $region44: #{tpu_custom_call.1} parent=1 // pred_region
      %s91 = ssub.s32 8192, 8192
      %92 = vsyncadd [#allocation11], %s91
      %s93 = sshll.u32 [#allocation12], 4
      %s94 = int_to_ptr.vmem [resolvable:$true] %s93
      %99 = dma.hbm_to_vmem [thread:$0]  %s10, 8192, %s94, [#allocation11], 256, 256, 16
    $region45: #{tpu_custom_call.1} parent=1 // pred_fallthru
      _
    // Predicated region
    $region46: #{tpu_custom_call.1} parent=1 // pred_check
      _
    $region47: #{tpu_custom_call.1} parent=1 // pred_check_branch
      %101 = sbr.rel (0) target = $region49
    $region48: #{tpu_custom_call.1} parent=1 // pred_region
      _
    $region49: #{tpu_custom_call.1} parent=1 // pred_fallthru
      _
    // Predicated region
    $region50: #{tpu_custom_call.1} parent=1 // pred_check
      _
    $region51: #{tpu_custom_call.1} parent=1 // pred_check_branch
      %103 = sbr.rel (0) target = $region53
    $region52: #{tpu_custom_call.1} parent=1 // pred_region
      %s105 = ssub.s32 8192, 8192
      %106 = vsyncadd [#allocation14], %s105
      %s107 = sshll.u32 [#allocation13], 4
      %s108 = int_to_ptr.vmem [resolvable:$true] %s107
      %113 = dma.hbm_to_vmem [thread:$0]  %s12, 8192, %s108, [#allocation14], 256, 256, 16
    $region53: #{tpu_custom_call.1} parent=1 // pred_fallthru
      _
    // Predicated region
    $region54: #{tpu_custom_call.1} parent=1 // pred_check
      _
    $region55: #{tpu_custom_call.1} parent=1 // pred_check_branch
      %115 = sbr.rel (0) target = $region57
    $region56: #{tpu_custom_call.1} parent=1 // pred_region
      _
    $region57: #{tpu_custom_call.1} parent=1 // pred_fallthru
      _
    // Predicated region
    $region58: #{tpu_custom_call.1} parent=1 // pred_check
      _
    $region59: #{tpu_custom_call.1} parent=1 // pred_check_branch
      %117 = sbr.rel (0) target = $region61
    $region60: #{tpu_custom_call.1} parent=1 // pred_region
      _
    $region61: #{tpu_custom_call.1} parent=1 // pred_fallthru
      _
    // Predicated region
    $region62: #{tpu_custom_call.1} parent=1 // pred_check
      _
    $region63: #{tpu_custom_call.1} parent=1 // pred_check_branch
      %119 = sbr.rel (0) target = $region65
    $region64: #{tpu_custom_call.1} parent=1 // pred_region
      _
    $region65: #{tpu_custom_call.1} parent=1 // pred_fallthru
      _
    // Predicated region
    $region66: #{tpu_custom_call.1} parent=1 // pred_check
      _
    $region67: #{tpu_custom_call.1} parent=1 // pred_check_branch
      %121 = sbr.rel (0) target = $region69
    $region68: #{tpu_custom_call.1} parent=1 // pred_region
      %122 = dma.done [#allocation5], 32
    $region69: #{tpu_custom_call.1} parent=1 // pred_fallthru
      _
    // Predicated region
    $region70: #{tpu_custom_call.1} parent=1 // pred_check
      _
    $region71: #{tpu_custom_call.1} parent=1 // pred_check_branch
      %124 = sbr.rel (0) target = $region73
    $region72: #{tpu_custom_call.1} parent=1 // pred_region
      %125 = dma.done [#allocation8], 1536
    $region73: #{tpu_custom_call.1} parent=1 // pred_fallthru
      _
    // Predicated region
    $region74: #{tpu_custom_call.1} parent=1 // pred_check
      _
    $region75: #{tpu_custom_call.1} parent=1 // pred_check_branch
      %127 = sbr.rel (0) target = $region77
    $region76: #{tpu_custom_call.1} parent=1 // pred_region
      %128 = dma.done [#allocation8], 8192
    $region77: #{tpu_custom_call.1} parent=1 // pred_fallthru
      _
    // Predicated region
    $region78: #{tpu_custom_call.1} parent=1 // pred_check
      _
    $region79: #{tpu_custom_call.1} parent=1 // pred_check_branch
      %130 = sbr.rel (0) target = $region81
    $region80: #{tpu_custom_call.1} parent=1 // pred_region
      %131 = dma.done [#allocation11], 8192
    $region81: #{tpu_custom_call.1} parent=1 // pred_fallthru
      _
    // Predicated region
    $region82: #{tpu_custom_call.1} parent=1 // pred_check
      _
    $region83: #{tpu_custom_call.1} parent=1 // pred_check_branch
      %133 = sbr.rel (0) target = $region85
    $region84: #{tpu_custom_call.1} parent=1 // pred_region
      %134 = dma.done [#allocation11], 8192
    $region85: #{tpu_custom_call.1} parent=1 // pred_fallthru
      _
    // Predicated region
    $region86: #{tpu_custom_call.1} parent=1 // pred_check
      _
    $region87: #{tpu_custom_call.1} parent=1 // pred_check_branch
      %136 = sbr.rel (0) target = $region89
    $region88: #{tpu_custom_call.1} parent=1 // pred_region
      %137 = dma.done [#allocation14], 8192
    $region89: #{tpu_custom_call.1} parent=1 // pred_fallthru
      _
    %v138 = vld [vmem:[%s0] sm:$0xff]
    %v139 = vld [vmem:[#allocation7] sm:$0xff]
    %v140 = vld [vmem:[#allocation7 + $0x8] sm:$0xff]
    %v141 = vld [vmem:[#allocation7 + $0x10] sm:$0xff]
    %v142 = vld [vmem:[#allocation7 + $0x18] sm:$0xff]
    %v143 = vld [vmem:[#allocation7 + $0x20] sm:$0xff]
    %v144 = vld [vmem:[#allocation7 + $0x28] sm:$0xff]
    %v145 = vld [vmem:[#allocation7 + $0x30] sm:$0xff]
    %v146 = vld [vmem:[#allocation7 + $0x38] sm:$0xff]
    %v147 = vld [vmem:[#allocation7 + $0x40] sm:$0xf]
    %v148 = vld [vmem:[#allocation7 + $0x48] sm:$0xf]
    %v149 = vld [vmem:[#allocation7 + $0x50] sm:$0xf]
    %v150 = vld [vmem:[#allocation7 + $0x58] sm:$0xf]
    %v151 = vld [vmem:[%s3] sm:$0xf]
    %v153 = vlaneseq
    %v154 = vshrl.u32 %v153, 7
    %v155 = vsub.s32 0, %v154
    %v156 = vrot.slane %v151, %v155
    %v157 = vlaneseq
    %v158 = vshrl.u32 %v157, 7
    %v159 = vsub.s32 1, %v158
    %v160 = vrot.slane %v151, %v159
    %v161 = vlaneseq
    %v162 = vshrl.u32 %v161, 7
    %v163 = vsub.s32 2, %v162
    %v164 = vrot.slane %v151, %v163
    %v165 = vlaneseq
    %v166 = vshrl.u32 %v165, 7
    %v167 = vsub.s32 3, %v166
    %v168 = vrot.slane %v151, %v167
    %vm173 = vcmask 162816
    %v175 = vsel %vm173, %v138, 0
    %vm177 = vcmask 1043456
    %v179 = vsel %vm177, %v147, 0
    %v182 = vsel %vm177, %v148, 0
    %v185 = vsel %vm177, %v149, 0
    %v188 = vsel %vm177, %v150, 0
    %190 = vmatprep.subr.mxu0 0.0
    %191 = vmatpush1.msra.mxu0 0.0
    %192 = vmatprep.subr.mxu0 0.0
    %193 = vmatpush1.msra.mxu0 0.0
    %194 = vmatprep.subr.mxu0 0.0
    %195 = vmatpush1.msra.mxu0 0.0
    %196 = vmatprep.subr.mxu0 0.0
    %197 = vmatpush1.msra.mxu0 0.0
    %198 = vmatprep.subr.mxu0 0.0
    %199 = vmatpush1.msra.mxu0 0.0
    %200 = vmatprep.subr.mxu0 0.0
    %201 = vmatpush1.msra.mxu0 0.0
    %202 = vmatprep.subr.mxu0 0.0
    %203 = vmatpush1.msra.mxu0 0.0
    %204 = vmatprep.subr.mxu0 0.0
    %205 = vmatpush1.msra.mxu0 0.0
    %206 = vmatprep.subr.mxu0 0.0
    %207 = vmatpush1.msra.mxu0 0.0
    %208 = vmatprep.subr.mxu0 0.0
    %209 = vmatpush1.msra.mxu0 0.0
    %210 = vmatprep.subr.mxu0 0.0
    %211 = vmatpush1.msra.mxu0 0.0
    %212 = vmatprep.subr.mxu0 0.0
    %213 = vmatpush1.msra.mxu0 0.0
    %214 = vmatprep.subr.mxu0 0.0
    %215 = vmatpush1.msra.mxu0 0.0
    %216 = vmatprep.subr.mxu0 %v182
    %217 = vmatpush1.msra.mxu0 %v179
    %218 = vmatprep.subr.mxu0 %v144
    %219 = vmatpush1.msra.mxu0 %v143
    %220 = vmatprep.subr.mxu0 %v140
    %221 = vmatpush1.msra.mxu0 %v139
    %222 = vmatprep.subr.mxu0 0.0
    %223 = vmatpush2.msra.mxu0 0.0
    %224 = vmatprep.subr.mxu0 0.0
    %225 = vmatpush2.msra.mxu0 0.0
    %226 = vmatprep.subr.mxu0 0.0
    %227 = vmatpush2.msra.mxu0 0.0
    %228 = vmatprep.subr.mxu0 0.0
    %229 = vmatpush2.msra.mxu0 0.0
    %230 = vmatprep.subr.mxu0 0.0
    %231 = vmatpush2.msra.mxu0 0.0
    %232 = vmatprep.subr.mxu0 0.0
    %233 = vmatpush2.msra.mxu0 0.0
    %234 = vmatprep.subr.mxu0 0.0
    %235 = vmatpush2.msra.mxu0 0.0
    %236 = vmatprep.subr.mxu0 0.0
    %237 = vmatpush2.msra.mxu0 0.0
    %238 = vmatprep.subr.mxu0 0.0
    %239 = vmatpush2.msra.mxu0 0.0
    %240 = vmatprep.subr.mxu0 0.0
    %241 = vmatpush2.msra.mxu0 0.0
    %242 = vmatprep.subr.mxu0 0.0
    %243 = vmatpush2.msra.mxu0 0.0
    %244 = vmatprep.subr.mxu0 0.0
    %245 = vmatpush2.msra.mxu0 0.0
    %246 = vmatprep.subr.mxu0 0.0
    %247 = vmatpush2.msra.mxu0 0.0
    %248 = vmatprep.subr.mxu0 0.0
    %249 = vmatpush2.msra.mxu0 0.0
    %250 = vmatprep.subr.mxu0 0.0
    %251 = vmatpush2.msra.mxu0 0.0
    %252 = vmatprep.subr.mxu0 0.0
    %253 = vmatpush2.msra.mxu0 0.0
    %254 = vmatprep.mubr.f32.mxu0 0.0
    %255 = vmatmul.mubr.f32.gmra.mxu0 %v175
    %v256 = vpop.f32.mrf.mxu0
    %v257 = vadd.f32 %v156, %v256
    %v258 = vpop.f32.mrf.mxu0
    %v259 = vadd.f32 %v160, %v258
    %260 = vdwg.mxu0
    %261 = vmatprep.subr.mxu0 0.0
    %262 = vmatpush1.msra.mxu0 0.0
    %263 = vmatprep.subr.mxu0 0.0
    %264 = vmatpush1.msra.mxu0 0.0
    %265 = vmatprep.subr.mxu0 0.0
    %266 = vmatpush1.msra.mxu0 0.0
    %267 = vmatprep.subr.mxu0 0.0
    %268 = vmatpush1.msra.mxu0 0.0
    %269 = vmatprep.subr.mxu0 0.0
    %270 = vmatpush1.msra.mxu0 0.0
    %271 = vmatprep.subr.mxu0 0.0
    %272 = vmatpush1.msra.mxu0 0.0
    %273 = vmatprep.subr.mxu0 0.0
    %274 = vmatpush1.msra.mxu0 0.0
    %275 = vmatprep.subr.mxu0 0.0
    %276 = vmatpush1.msra.mxu0 0.0
    %277 = vmatprep.subr.mxu0 0.0
    %278 = vmatpush1.msra.mxu0 0.0
    %279 = vmatprep.subr.mxu0 0.0
    %280 = vmatpush1.msra.mxu0 0.0
    %281 = vmatprep.subr.mxu0 0.0
    %282 = vmatpush1.msra.mxu0 0.0
    %283 = vmatprep.subr.mxu0 0.0
    %284 = vmatpush1.msra.mxu0 0.0
    %285 = vmatprep.subr.mxu0 0.0
    %286 = vmatpush1.msra.mxu0 0.0
    %287 = vmatprep.subr.mxu0 %v188
    %288 = vmatpush1.msra.mxu0 %v185
    %289 = vmatprep.subr.mxu0 %v146
    %290 = vmatpush1.msra.mxu0 %v145
    %291 = vmatprep.subr.mxu0 %v142
    %292 = vmatpush1.msra.mxu0 %v141
    %293 = vmatprep.subr.mxu0 0.0
    %294 = vmatpush2.msra.mxu0 0.0
    %295 = vmatprep.subr.mxu0 0.0
    %296 = vmatpush2.msra.mxu0 0.0
    %297 = vmatprep.subr.mxu0 0.0
    %298 = vmatpush2.msra.mxu0 0.0
    %299 = vmatprep.subr.mxu0 0.0
    %300 = vmatpush2.msra.mxu0 0.0
    %301 = vmatprep.subr.mxu0 0.0
    %302 = vmatpush2.msra.mxu0 0.0
    %303 = vmatprep.subr.mxu0 0.0
    %304 = vmatpush2.msra.mxu0 0.0
    %305 = vmatprep.subr.mxu0 0.0
    %306 = vmatpush2.msra.mxu0 0.0
    %307 = vmatprep.subr.mxu0 0.0
    %308 = vmatpush2.msra.mxu0 0.0
    %309 = vmatprep.subr.mxu0 0.0
    %310 = vmatpush2.msra.mxu0 0.0
    %311 = vmatprep.subr.mxu0 0.0
    %312 = vmatpush2.msra.mxu0 0.0
    %313 = vmatprep.subr.mxu0 0.0
    %314 = vmatpush2.msra.mxu0 0.0
    %315 = vmatprep.subr.mxu0 0.0
    %316 = vmatpush2.msra.mxu0 0.0
    %317 = vmatprep.subr.mxu0 0.0
    %318 = vmatpush2.msra.mxu0 0.0
    %319 = vmatprep.subr.mxu0 0.0
    %320 = vmatpush2.msra.mxu0 0.0
    %321 = vmatprep.subr.mxu0 0.0
    %322 = vmatpush2.msra.mxu0 0.0
    %323 = vmatprep.subr.mxu0 0.0
    %324 = vmatpush2.msra.mxu0 0.0
    %325 = vmatprep.mubr.f32.mxu0 0.0
    %326 = vmatmul.mubr.f32.gmra.mxu0 %v175
    %v327 = vpop.f32.mrf.mxu0
    %v328 = vadd.f32 %v164, %v327
    %v329 = vpop.f32.mrf.mxu0
    %v330 = vadd.f32 %v168, %v329
    %331 = vdwg.mxu0
    %v332 = vmax.f32 %v257, 0.0
    %v333 = vmax.f32 %v259, 0.0
    %v334 = vmax.f32 %v328, 0.0
    %v335 = vmax.f32 %v330, 0.0
    %v336 = vld [vmem:[#allocation4] sm:$0x3]
    %v337 = vld [vmem:[#allocation9] sm:$0xff]
    %v338 = vld [vmem:[#allocation9 + $0x8] sm:$0xff]
    %v339 = vld [vmem:[#allocation9 + $0x10] sm:$0xff]
    %v340 = vld [vmem:[#allocation9 + $0x18] sm:$0xff]
    %v341 = vld [vmem:[#allocation9 + $0x20] sm:$0xff]
    %v342 = vld [vmem:[#allocation9 + $0x28] sm:$0xff]
    %v343 = vld [vmem:[#allocation9 + $0x30] sm:$0xff]
    %v344 = vld [vmem:[#allocation9 + $0x38] sm:$0xff]
    %v345 = vld [vmem:[#allocation9 + $0x40] sm:$0xff]
    %v346 = vld [vmem:[#allocation9 + $0x48] sm:$0xff]
    %v347 = vld [vmem:[#allocation9 + $0x50] sm:$0xff]
    %v348 = vld [vmem:[#allocation9 + $0x58] sm:$0xff]
    %v349 = vld [vmem:[#allocation9 + $0x60] sm:$0xff]
    %v350 = vld [vmem:[#allocation9 + $0x68] sm:$0xff]
    %v351 = vld [vmem:[#allocation9 + $0x70] sm:$0xff]
    %v352 = vld [vmem:[#allocation9 + $0x78] sm:$0xff]
    %v353 = vld [vmem:[#allocation9 + $0x80] sm:$0xff]
    %v354 = vld [vmem:[#allocation9 + $0x88] sm:$0xff]
    %v355 = vld [vmem:[#allocation9 + $0x90] sm:$0xff]
    %v356 = vld [vmem:[#allocation9 + $0x98] sm:$0xff]
    %v357 = vld [vmem:[#allocation9 + $0xa0] sm:$0xff]
    %v358 = vld [vmem:[#allocation9 + $0xa8] sm:$0xff]
    %v359 = vld [vmem:[#allocation9 + $0xb0] sm:$0xff]
    %v360 = vld [vmem:[#allocation9 + $0xb8] sm:$0xff]
    %v361 = vld [vmem:[#allocation9 + $0xc0] sm:$0xff]
    %v362 = vld [vmem:[#allocation9 + $0xc8] sm:$0xff]
    %v363 = vld [vmem:[#allocation9 + $0xd0] sm:$0xff]
    %v364 = vld [vmem:[#allocation9 + $0xd8] sm:$0xff]
    %v365 = vld [vmem:[#allocation9 + $0xe0] sm:$0xff]
    %v366 = vld [vmem:[#allocation9 + $0xe8] sm:$0xff]
    %v367 = vld [vmem:[#allocation9 + $0xf0] sm:$0xff]
    %v368 = vld [vmem:[#allocation9 + $0xf8] sm:$0xff]
    %v369 = vld [vmem:[#allocation9 + $0x100] sm:$0xff]
    %v370 = vld [vmem:[#allocation9 + $0x108] sm:$0xff]
    %v371 = vld [vmem:[#allocation9 + $0x110] sm:$0xff]
    %v372 = vld [vmem:[#allocation9 + $0x118] sm:$0xff]
    %v373 = vld [vmem:[#allocation9 + $0x120] sm:$0xff]
    %v374 = vld [vmem:[#allocation9 + $0x128] sm:$0xff]
    %v375 = vld [vmem:[#allocation9 + $0x130] sm:$0xff]
    %v376 = vld [vmem:[#allocation9 + $0x138] sm:$0xff]
    %v377 = vld [vmem:[#allocation9 + $0x140] sm:$0xff]
    %v378 = vld [vmem:[#allocation9 + $0x148] sm:$0xff]
    %v379 = vld [vmem:[#allocation9 + $0x150] sm:$0xff]
    %v380 = vld [vmem:[#allocation9 + $0x158] sm:$0xff]
    %v381 = vld [vmem:[#allocation9 + $0x160] sm:$0xff]
    %v382 = vld [vmem:[#allocation9 + $0x168] sm:$0xff]
    %v383 = vld [vmem:[#allocation9 + $0x170] sm:$0xff]
    %v384 = vld [vmem:[#allocation9 + $0x178] sm:$0xff]
    %v385 = vld [vmem:[#allocation9 + $0x180] sm:$0xff]
    %v386 = vld [vmem:[#allocation9 + $0x188] sm:$0xff]
    %v387 = vld [vmem:[#allocation9 + $0x190] sm:$0xff]
    %v388 = vld [vmem:[#allocation9 + $0x198] sm:$0xff]
    %v389 = vld [vmem:[#allocation9 + $0x1a0] sm:$0xff]
    %v390 = vld [vmem:[#allocation9 + $0x1a8] sm:$0xff]
    %v391 = vld [vmem:[#allocation9 + $0x1b0] sm:$0xff]
    %v392 = vld [vmem:[#allocation9 + $0x1b8] sm:$0xff]
    %v393 = vld [vmem:[#allocation9 + $0x1c0] sm:$0xff]
    %v394 = vld [vmem:[#allocation9 + $0x1c8] sm:$0xff]
    %v395 = vld [vmem:[#allocation9 + $0x1d0] sm:$0xff]
    %v396 = vld [vmem:[#allocation9 + $0x1d8] sm:$0xff]
    %v397 = vld [vmem:[#allocation9 + $0x1e0] sm:$0xff]
    %v398 = vld [vmem:[#allocation9 + $0x1e8] sm:$0xff]
    %v399 = vld [vmem:[#allocation9 + $0x1f0] sm:$0xff]
    %v400 = vld [vmem:[#allocation9 + $0x1f8] sm:$0xff]
    %v401 = vld [vmem:[%s5] sm:$0x3]
    %v403 = vlaneseq
    %v404 = vshrl.u32 %v403, 7
    %v405 = vsub.s32 0, %v404
    %v406 = vrot.slane %v401, %v405
    %v407 = vlaneseq
    %v408 = vshrl.u32 %v407, 7
    %v409 = vsub.s32 1, %v408
    %v410 = vrot.slane %v401, %v409
    %413 = vmatprep.subr.mxu0 %v368
    %414 = vmatpush1.msra.mxu0 %v367
    %415 = vmatprep.subr.mxu0 %v366
    %416 = vmatpush1.msra.mxu0 %v365
    %417 = vmatprep.subr.mxu0 %v364
    %418 = vmatpush1.msra.mxu0 %v363
    %419 = vmatprep.subr.mxu0 %v362
    %420 = vmatpush1.msra.mxu0 %v361
    %421 = vmatprep.subr.mxu0 %v360
    %422 = vmatpush1.msra.mxu0 %v359
    %423 = vmatprep.subr.mxu0 %v358
    %424 = vmatpush1.msra.mxu0 %v357
    %425 = vmatprep.subr.mxu0 %v356
    %426 = vmatpush1.msra.mxu0 %v355
    %427 = vmatprep.subr.mxu0 %v354
    %428 = vmatpush1.msra.mxu0 %v353
    %429 = vmatprep.subr.mxu0 %v352
    %430 = vmatpush1.msra.mxu0 %v351
    %431 = vmatprep.subr.mxu0 %v350
    %432 = vmatpush1.msra.mxu0 %v349
    %433 = vmatprep.subr.mxu0 %v348
    %434 = vmatpush1.msra.mxu0 %v347
    %435 = vmatprep.subr.mxu0 %v346
    %436 = vmatpush1.msra.mxu0 %v345
    %437 = vmatprep.subr.mxu0 %v344
    %438 = vmatpush1.msra.mxu0 %v343
    %439 = vmatprep.subr.mxu0 %v342
    %440 = vmatpush1.msra.mxu0 %v341
    %441 = vmatprep.subr.mxu0 %v340
    %442 = vmatpush1.msra.mxu0 %v339
    %443 = vmatprep.subr.mxu0 %v338
    %444 = vmatpush1.msra.mxu0 %v337
    %445 = vmatprep.subr.mxu0 %v400
    %446 = vmatpush2.msra.mxu0 %v399
    %447 = vmatprep.subr.mxu0 %v398
    %448 = vmatpush2.msra.mxu0 %v397
    %449 = vmatprep.subr.mxu0 %v396
    %450 = vmatpush2.msra.mxu0 %v395
    %451 = vmatprep.subr.mxu0 %v394
    %452 = vmatpush2.msra.mxu0 %v393
    %453 = vmatprep.subr.mxu0 %v392
    %454 = vmatpush2.msra.mxu0 %v391
    %455 = vmatprep.subr.mxu0 %v390
    %456 = vmatpush2.msra.mxu0 %v389
    %457 = vmatprep.subr.mxu0 %v388
    %458 = vmatpush2.msra.mxu0 %v387
    %459 = vmatprep.subr.mxu0 %v386
    %460 = vmatpush2.msra.mxu0 %v385
    %461 = vmatprep.subr.mxu0 %v384
    %462 = vmatpush2.msra.mxu0 %v383
    %463 = vmatprep.subr.mxu0 %v382
    %464 = vmatpush2.msra.mxu0 %v381
    %465 = vmatprep.subr.mxu0 %v380
    %466 = vmatpush2.msra.mxu0 %v379
    %467 = vmatprep.subr.mxu0 %v378
    %468 = vmatpush2.msra.mxu0 %v377
    %469 = vmatprep.subr.mxu0 %v376
    %470 = vmatpush2.msra.mxu0 %v375
    %471 = vmatprep.subr.mxu0 %v374
    %472 = vmatpush2.msra.mxu0 %v373
    %473 = vmatprep.subr.mxu0 %v372
    %474 = vmatpush2.msra.mxu0 %v371
    %475 = vmatprep.subr.mxu0 %v370
    %476 = vmatpush2.msra.mxu0 %v369
    %477 = vmatprep.mubr.f32.mxu0 %v333
    %478 = vmatmul.mubr.f32.gmra.mxu0 %v332
    %v479 = vpop.f32.mrf.mxu0
    %v480 = vadd.f32 %v406, %v479
    %v481 = vpop.f32.mrf.mxu0
    %v482 = vadd.f32 %v410, %v481
    %483 = vdwg.mxu0
    %v484 = vmax.f32 %v480, 0.0
    %v485 = vmax.f32 %v482, 0.0
    %v487 = vlaneseq
    %v488 = vshrl.u32 %v487, 7
    %v489 = vsub.s32 0, %v488
    %v490 = vrot.slane %v336, %v489
    %v491 = vlaneseq
    %v492 = vshrl.u32 %v491, 7
    %v493 = vsub.s32 1, %v492
    %v494 = vrot.slane %v336, %v493
    %v497 = vmul.f32 %v490, %v484
    %v498 = vmul.f32 %v494, %v485
    %v499 = vld [vmem:[#allocation10] sm:$0xff]
    %v500 = vld [vmem:[#allocation10 + $0x8] sm:$0xff]
    %v501 = vld [vmem:[#allocation10 + $0x10] sm:$0xff]
    %v502 = vld [vmem:[#allocation10 + $0x18] sm:$0xff]
    %v503 = vld [vmem:[#allocation10 + $0x20] sm:$0xff]
    %v504 = vld [vmem:[#allocation10 + $0x28] sm:$0xff]
    %v505 = vld [vmem:[#allocation10 + $0x30] sm:$0xff]
    %v506 = vld [vmem:[#allocation10 + $0x38] sm:$0xff]
    %v507 = vld [vmem:[#allocation10 + $0x40] sm:$0xff]
    %v508 = vld [vmem:[#allocation10 + $0x48] sm:$0xff]
    %v509 = vld [vmem:[#allocation10 + $0x50] sm:$0xff]
    %v510 = vld [vmem:[#allocation10 + $0x58] sm:$0xff]
    %v511 = vld [vmem:[#allocation10 + $0x60] sm:$0xff]
    %v512 = vld [vmem:[#allocation10 + $0x68] sm:$0xff]
    %v513 = vld [vmem:[#allocation10 + $0x70] sm:$0xff]
    %v514 = vld [vmem:[#allocation10 + $0x78] sm:$0xff]
    %v515 = vld [vmem:[#allocation10 + $0x80] sm:$0xff]
    %v516 = vld [vmem:[#allocation10 + $0x88] sm:$0xff]
    %v517 = vld [vmem:[#allocation10 + $0x90] sm:$0xff]
    %v518 = vld [vmem:[#allocation10 + $0x98] sm:$0xff]
    %v519 = vld [vmem:[#allocation10 + $0xa0] sm:$0xff]
    %v520 = vld [vmem:[#allocation10 + $0xa8] sm:$0xff]
    %v521 = vld [vmem:[#allocation10 + $0xb0] sm:$0xff]
    %v522 = vld [vmem:[#allocation10 + $0xb8] sm:$0xff]
    %v523 = vld [vmem:[#allocation10 + $0xc0] sm:$0xff]
    %v524 = vld [vmem:[#allocation10 + $0xc8] sm:$0xff]
    %v525 = vld [vmem:[#allocation10 + $0xd0] sm:$0xff]
    %v526 = vld [vmem:[#allocation10 + $0xd8] sm:$0xff]
    %v527 = vld [vmem:[#allocation10 + $0xe0] sm:$0xff]
    %v528 = vld [vmem:[#allocation10 + $0xe8] sm:$0xff]
    %v529 = vld [vmem:[#allocation10 + $0xf0] sm:$0xff]
    %v530 = vld [vmem:[#allocation10 + $0xf8] sm:$0xff]
    %v531 = vld [vmem:[#allocation10 + $0x100] sm:$0xff]
    %v532 = vld [vmem:[#allocation10 + $0x108] sm:$0xff]
    %v533 = vld [vmem:[#allocation10 + $0x110] sm:$0xff]
    %v534 = vld [vmem:[#allocation10 + $0x118] sm:$0xff]
    %v535 = vld [vmem:[#allocation10 + $0x120] sm:$0xff]
    %v536 = vld [vmem:[#allocation10 + $0x128] sm:$0xff]
    %v537 = vld [vmem:[#allocation10 + $0x130] sm:$0xff]
    %v538 = vld [vmem:[#allocation10 + $0x138] sm:$0xff]
    %v539 = vld [vmem:[#allocation10 + $0x140] sm:$0xff]
    %v540 = vld [vmem:[#allocation10 + $0x148] sm:$0xff]
    %v541 = vld [vmem:[#allocation10 + $0x150] sm:$0xff]
    %v542 = vld [vmem:[#allocation10 + $0x158] sm:$0xff]
    %v543 = vld [vmem:[#allocation10 + $0x160] sm:$0xff]
    %v544 = vld [vmem:[#allocation10 + $0x168] sm:$0xff]
    %v545 = vld [vmem:[#allocation10 + $0x170] sm:$0xff]
    %v546 = vld [vmem:[#allocation10 + $0x178] sm:$0xff]
    %v547 = vld [vmem:[#allocation10 + $0x180] sm:$0xff]
    %v548 = vld [vmem:[#allocation10 + $0x188] sm:$0xff]
    %v549 = vld [vmem:[#allocation10 + $0x190] sm:$0xff]
    %v550 = vld [vmem:[#allocation10 + $0x198] sm:$0xff]
    %v551 = vld [vmem:[#allocation10 + $0x1a0] sm:$0xff]
    %v552 = vld [vmem:[#allocation10 + $0x1a8] sm:$0xff]
    %v553 = vld [vmem:[#allocation10 + $0x1b0] sm:$0xff]
    %v554 = vld [vmem:[#allocation10 + $0x1b8] sm:$0xff]
    %v555 = vld [vmem:[#allocation10 + $0x1c0] sm:$0xff]
    %v556 = vld [vmem:[#allocation10 + $0x1c8] sm:$0xff]
    %v557 = vld [vmem:[#allocation10 + $0x1d0] sm:$0xff]
    %v558 = vld [vmem:[#allocation10 + $0x1d8] sm:$0xff]
    %v559 = vld [vmem:[#allocation10 + $0x1e0] sm:$0xff]
    %v560 = vld [vmem:[#allocation10 + $0x1e8] sm:$0xff]
    %v561 = vld [vmem:[#allocation10 + $0x1f0] sm:$0xff]
    %v562 = vld [vmem:[#allocation10 + $0x1f8] sm:$0xff]
    %v563 = vld [vmem:[%s7] sm:$0x3]
    %v565 = vlaneseq
    %v566 = vshrl.u32 %v565, 7
    %v567 = vsub.s32 0, %v566
    %v568 = vrot.slane %v563, %v567
    %v569 = vlaneseq
    %v570 = vshrl.u32 %v569, 7
    %v571 = vsub.s32 1, %v570
    %v572 = vrot.slane %v563, %v571
    %575 = vmatprep.subr.mxu0 %v530
    %576 = vmatpush1.msra.mxu0 %v529
    %577 = vmatprep.subr.mxu0 %v528
    %578 = vmatpush1.msra.mxu0 %v527
    %579 = vmatprep.subr.mxu0 %v526
    %580 = vmatpush1.msra.mxu0 %v525
    %581 = vmatprep.subr.mxu0 %v524
    %582 = vmatpush1.msra.mxu0 %v523
    %583 = vmatprep.subr.mxu0 %v522
    %584 = vmatpush1.msra.mxu0 %v521
    %585 = vmatprep.subr.mxu0 %v520
    %586 = vmatpush1.msra.mxu0 %v519
    %587 = vmatprep.subr.mxu0 %v518
    %588 = vmatpush1.msra.mxu0 %v517
    %589 = vmatprep.subr.mxu0 %v516
    %590 = vmatpush1.msra.mxu0 %v515
    %591 = vmatprep.subr.mxu0 %v514
    %592 = vmatpush1.msra.mxu0 %v513
    %593 = vmatprep.subr.mxu0 %v512
    %594 = vmatpush1.msra.mxu0 %v511
    %595 = vmatprep.subr.mxu0 %v510
    %596 = vmatpush1.msra.mxu0 %v509
    %597 = vmatprep.subr.mxu0 %v508
    %598 = vmatpush1.msra.mxu0 %v507
    %599 = vmatprep.subr.mxu0 %v506
    %600 = vmatpush1.msra.mxu0 %v505
    %601 = vmatprep.subr.mxu0 %v504
    %602 = vmatpush1.msra.mxu0 %v503
    %603 = vmatprep.subr.mxu0 %v502
    %604 = vmatpush1.msra.mxu0 %v501
    %605 = vmatprep.subr.mxu0 %v500
    %606 = vmatpush1.msra.mxu0 %v499
    %607 = vmatprep.subr.mxu0 %v562
    %608 = vmatpush2.msra.mxu0 %v561
    %609 = vmatprep.subr.mxu0 %v560
    %610 = vmatpush2.msra.mxu0 %v559
    %611 = vmatprep.subr.mxu0 %v558
    %612 = vmatpush2.msra.mxu0 %v557
    %613 = vmatprep.subr.mxu0 %v556
    %614 = vmatpush2.msra.mxu0 %v555
    %615 = vmatprep.subr.mxu0 %v554
    %616 = vmatpush2.msra.mxu0 %v553
    %617 = vmatprep.subr.mxu0 %v552
    %618 = vmatpush2.msra.mxu0 %v551
    %619 = vmatprep.subr.mxu0 %v550
    %620 = vmatpush2.msra.mxu0 %v549
    %621 = vmatprep.subr.mxu0 %v548
    %622 = vmatpush2.msra.mxu0 %v547
    %623 = vmatprep.subr.mxu0 %v546
    %624 = vmatpush2.msra.mxu0 %v545
    %625 = vmatprep.subr.mxu0 %v544
    %626 = vmatpush2.msra.mxu0 %v543
    %627 = vmatprep.subr.mxu0 %v542
    %628 = vmatpush2.msra.mxu0 %v541
    %629 = vmatprep.subr.mxu0 %v540
    %630 = vmatpush2.msra.mxu0 %v539
    %631 = vmatprep.subr.mxu0 %v538
    %632 = vmatpush2.msra.mxu0 %v537
    %633 = vmatprep.subr.mxu0 %v536
    %634 = vmatpush2.msra.mxu0 %v535
    %635 = vmatprep.subr.mxu0 %v534
    %636 = vmatpush2.msra.mxu0 %v533
    %637 = vmatprep.subr.mxu0 %v532
    %638 = vmatpush2.msra.mxu0 %v531
    %639 = vmatprep.mubr.f32.mxu0 %v498
    %640 = vmatmul.mubr.f32.gmra.mxu0 %v497
    %v641 = vpop.f32.mrf.mxu0
    %v642 = vadd.f32 %v568, %v641
    %v643 = vpop.f32.mrf.mxu0
    %v644 = vadd.f32 %v572, %v643
    %645 = vdwg.mxu0
    %v646 = vmax.f32 %v642, 0.0
    %v647 = vmax.f32 %v644, 0.0
    %v648 = vld [vmem:[%s8] sm:$0x3]
    %v650 = vlaneseq
    %v651 = vshrl.u32 %v650, 7
    %v652 = vsub.s32 0, %v651
    %v653 = vrot.slane %v648, %v652
    %v654 = vlaneseq
    %v655 = vshrl.u32 %v654, 7
    %v656 = vsub.s32 1, %v655
    %v657 = vrot.slane %v648, %v656
    %v660 = vmul.f32 %v646, %v653
    %v661 = vmul.f32 %v647, %v657
    %v662 = vadd.f32 %v660, %v661
    %663 = vadd.xlane.f32.xlu0 %v662
    %v664 = vpop.xlane.xlu0 %663
    %v665 = vld [vmem:[#allocation2] sm:$0x1]
    %v667 = vlaneseq
    %v668 = vshrl.u32 %v667, 7
    %v669 = vsub.s32 0, %v668
    %v670 = vrot.slane %v665, %v669
    %v672 = vadd.f32 %v664, %v670
    %v673 = vld [vmem:[#allocation12] sm:$0xff]
    %v674 = vld [vmem:[#allocation12 + $0x8] sm:$0xff]
    %v675 = vld [vmem:[#allocation12 + $0x10] sm:$0xff]
    %v676 = vld [vmem:[#allocation12 + $0x18] sm:$0xff]
    %v677 = vld [vmem:[#allocation12 + $0x20] sm:$0xff]
    %v678 = vld [vmem:[#allocation12 + $0x28] sm:$0xff]
    %v679 = vld [vmem:[#allocation12 + $0x30] sm:$0xff]
    %v680 = vld [vmem:[#allocation12 + $0x38] sm:$0xff]
    %v681 = vld [vmem:[#allocation12 + $0x40] sm:$0xff]
    %v682 = vld [vmem:[#allocation12 + $0x48] sm:$0xff]
    %v683 = vld [vmem:[#allocation12 + $0x50] sm:$0xff]
    %v684 = vld [vmem:[#allocation12 + $0x58] sm:$0xff]
    %v685 = vld [vmem:[#allocation12 + $0x60] sm:$0xff]
    %v686 = vld [vmem:[#allocation12 + $0x68] sm:$0xff]
    %v687 = vld [vmem:[#allocation12 + $0x70] sm:$0xff]
    %v688 = vld [vmem:[#allocation12 + $0x78] sm:$0xff]
    %v689 = vld [vmem:[#allocation12 + $0x80] sm:$0xff]
    %v690 = vld [vmem:[#allocation12 + $0x88] sm:$0xff]
    %v691 = vld [vmem:[#allocation12 + $0x90] sm:$0xff]
    %v692 = vld [vmem:[#allocation12 + $0x98] sm:$0xff]
    %v693 = vld [vmem:[#allocation12 + $0xa0] sm:$0xff]
    %v694 = vld [vmem:[#allocation12 + $0xa8] sm:$0xff]
    %v695 = vld [vmem:[#allocation12 + $0xb0] sm:$0xff]
    %v696 = vld [vmem:[#allocation12 + $0xb8] sm:$0xff]
    %v697 = vld [vmem:[#allocation12 + $0xc0] sm:$0xff]
    %v698 = vld [vmem:[#allocation12 + $0xc8] sm:$0xff]
    %v699 = vld [vmem:[#allocation12 + $0xd0] sm:$0xff]
    %v700 = vld [vmem:[#allocation12 + $0xd8] sm:$0xff]
    %v701 = vld [vmem:[#allocation12 + $0xe0] sm:$0xff]
    %v702 = vld [vmem:[#allocation12 + $0xe8] sm:$0xff]
    %v703 = vld [vmem:[#allocation12 + $0xf0] sm:$0xff]
    %v704 = vld [vmem:[#allocation12 + $0xf8] sm:$0xff]
    %v705 = vld [vmem:[#allocation12 + $0x100] sm:$0xff]
    %v706 = vld [vmem:[#allocation12 + $0x108] sm:$0xff]
    %v707 = vld [vmem:[#allocation12 + $0x110] sm:$0xff]
    %v708 = vld [vmem:[#allocation12 + $0x118] sm:$0xff]
    %v709 = vld [vmem:[#allocation12 + $0x120] sm:$0xff]
    %v710 = vld [vmem:[#allocation12 + $0x128] sm:$0xff]
    %v711 = vld [vmem:[#allocation12 + $0x130] sm:$0xff]
    %v712 = vld [vmem:[#allocation12 + $0x138] sm:$0xff]
    %v713 = vld [vmem:[#allocation12 + $0x140] sm:$0xff]
    %v714 = vld [vmem:[#allocation12 + $0x148] sm:$0xff]
    %v715 = vld [vmem:[#allocation12 + $0x150] sm:$0xff]
    %v716 = vld [vmem:[#allocation12 + $0x158] sm:$0xff]
    %v717 = vld [vmem:[#allocation12 + $0x160] sm:$0xff]
    %v718 = vld [vmem:[#allocation12 + $0x168] sm:$0xff]
    %v719 = vld [vmem:[#allocation12 + $0x170] sm:$0xff]
    %v720 = vld [vmem:[#allocation12 + $0x178] sm:$0xff]
    %v721 = vld [vmem:[#allocation12 + $0x180] sm:$0xff]
    %v722 = vld [vmem:[#allocation12 + $0x188] sm:$0xff]
    %v723 = vld [vmem:[#allocation12 + $0x190] sm:$0xff]
    %v724 = vld [vmem:[#allocation12 + $0x198] sm:$0xff]
    %v725 = vld [vmem:[#allocation12 + $0x1a0] sm:$0xff]
    %v726 = vld [vmem:[#allocation12 + $0x1a8] sm:$0xff]
    %v727 = vld [vmem:[#allocation12 + $0x1b0] sm:$0xff]
    %v728 = vld [vmem:[#allocation12 + $0x1b8] sm:$0xff]
    %v729 = vld [vmem:[#allocation12 + $0x1c0] sm:$0xff]
    %v730 = vld [vmem:[#allocation12 + $0x1c8] sm:$0xff]
    %v731 = vld [vmem:[#allocation12 + $0x1d0] sm:$0xff]
    %v732 = vld [vmem:[#allocation12 + $0x1d8] sm:$0xff]
    %v733 = vld [vmem:[#allocation12 + $0x1e0] sm:$0xff]
    %v734 = vld [vmem:[#allocation12 + $0x1e8] sm:$0xff]
    %v735 = vld [vmem:[#allocation12 + $0x1f0] sm:$0xff]
    %v736 = vld [vmem:[#allocation12 + $0x1f8] sm:$0xff]
    %v737 = vld [vmem:[%s11] sm:$0x3]
    %v739 = vlaneseq
    %v740 = vshrl.u32 %v739, 7
    %v741 = vsub.s32 0, %v740
    %v742 = vrot.slane %v737, %v741
    %v743 = vlaneseq
    %v744 = vshrl.u32 %v743, 7
    %v745 = vsub.s32 1, %v744
    %v746 = vrot.slane %v737, %v745
    %749 = vmatprep.subr.mxu0 %v704
    %750 = vmatpush1.msra.mxu0 %v703
    %751 = vmatprep.subr.mxu0 %v702
    %752 = vmatpush1.msra.mxu0 %v701
    %753 = vmatprep.subr.mxu0 %v700
    %754 = vmatpush1.msra.mxu0 %v699
    %755 = vmatprep.subr.mxu0 %v698
    %756 = vmatpush1.msra.mxu0 %v697
    %757 = vmatprep.subr.mxu0 %v696
    %758 = vmatpush1.msra.mxu0 %v695
    %759 = vmatprep.subr.mxu0 %v694
    %760 = vmatpush1.msra.mxu0 %v693
    %761 = vmatprep.subr.mxu0 %v692
    %762 = vmatpush1.msra.mxu0 %v691
    %763 = vmatprep.subr.mxu0 %v690
    %764 = vmatpush1.msra.mxu0 %v689
    %765 = vmatprep.subr.mxu0 %v688
    %766 = vmatpush1.msra.mxu0 %v687
    %767 = vmatprep.subr.mxu0 %v686
    %768 = vmatpush1.msra.mxu0 %v685
    %769 = vmatprep.subr.mxu0 %v684
    %770 = vmatpush1.msra.mxu0 %v683
    %771 = vmatprep.subr.mxu0 %v682
    %772 = vmatpush1.msra.mxu0 %v681
    %773 = vmatprep.subr.mxu0 %v680
    %774 = vmatpush1.msra.mxu0 %v679
    %775 = vmatprep.subr.mxu0 %v678
    %776 = vmatpush1.msra.mxu0 %v677
    %777 = vmatprep.subr.mxu0 %v676
    %778 = vmatpush1.msra.mxu0 %v675
    %779 = vmatprep.subr.mxu0 %v674
    %780 = vmatpush1.msra.mxu0 %v673
    %781 = vmatprep.subr.mxu0 %v736
    %782 = vmatpush2.msra.mxu0 %v735
    %783 = vmatprep.subr.mxu0 %v734
    %784 = vmatpush2.msra.mxu0 %v733
    %785 = vmatprep.subr.mxu0 %v732
    %786 = vmatpush2.msra.mxu0 %v731
    %787 = vmatprep.subr.mxu0 %v730
    %788 = vmatpush2.msra.mxu0 %v729
    %789 = vmatprep.subr.mxu0 %v728
    %790 = vmatpush2.msra.mxu0 %v727
    %791 = vmatprep.subr.mxu0 %v726
    %792 = vmatpush2.msra.mxu0 %v725
    %793 = vmatprep.subr.mxu0 %v724
    %794 = vmatpush2.msra.mxu0 %v723
    %795 = vmatprep.subr.mxu0 %v722
    %796 = vmatpush2.msra.mxu0 %v721
    %797 = vmatprep.subr.mxu0 %v720
    %798 = vmatpush2.msra.mxu0 %v719
    %799 = vmatprep.subr.mxu0 %v718
    %800 = vmatpush2.msra.mxu0 %v717
    %801 = vmatprep.subr.mxu0 %v716
    %802 = vmatpush2.msra.mxu0 %v715
    %803 = vmatprep.subr.mxu0 %v714
    %804 = vmatpush2.msra.mxu0 %v713
    %805 = vmatprep.subr.mxu0 %v712
    %806 = vmatpush2.msra.mxu0 %v711
    %807 = vmatprep.subr.mxu0 %v710
    %808 = vmatpush2.msra.mxu0 %v709
    %809 = vmatprep.subr.mxu0 %v708
    %810 = vmatpush2.msra.mxu0 %v707
    %811 = vmatprep.subr.mxu0 %v706
    %812 = vmatpush2.msra.mxu0 %v705
    %813 = vmatprep.mubr.f32.mxu0 %v335
    %814 = vmatmul.mubr.f32.gmra.mxu0 %v334
    %v815 = vpop.f32.mrf.mxu0
    %v816 = vadd.f32 %v742, %v815
    %v817 = vpop.f32.mrf.mxu0
    %v818 = vadd.f32 %v746, %v817
    %819 = vdwg.mxu0
    %v820 = vmax.f32 %v816, 0.0
    %v821 = vmax.f32 %v818, 0.0
    %v822 = vmul.f32 %v490, %v820
    %v823 = vmul.f32 %v494, %v821
    %v824 = vld [vmem:[#allocation13] sm:$0xff]
    %v825 = vld [vmem:[#allocation13 + $0x8] sm:$0xff]
    %v826 = vld [vmem:[#allocation13 + $0x10] sm:$0xff]
    %v827 = vld [vmem:[#allocation13 + $0x18] sm:$0xff]
    %v828 = vld [vmem:[#allocation13 + $0x20] sm:$0xff]
    %v829 = vld [vmem:[#allocation13 + $0x28] sm:$0xff]
    %v830 = vld [vmem:[#allocation13 + $0x30] sm:$0xff]
    %v831 = vld [vmem:[#allocation13 + $0x38] sm:$0xff]
    %v832 = vld [vmem:[#allocation13 + $0x40] sm:$0xff]
    %v833 = vld [vmem:[#allocation13 + $0x48] sm:$0xff]
    %v834 = vld [vmem:[#allocation13 + $0x50] sm:$0xff]
    %v835 = vld [vmem:[#allocation13 + $0x58] sm:$0xff]
    %v836 = vld [vmem:[#allocation13 + $0x60] sm:$0xff]
    %v837 = vld [vmem:[#allocation13 + $0x68] sm:$0xff]
    %v838 = vld [vmem:[#allocation13 + $0x70] sm:$0xff]
    %v839 = vld [vmem:[#allocation13 + $0x78] sm:$0xff]
    %v840 = vld [vmem:[#allocation13 + $0x80] sm:$0xff]
    %v841 = vld [vmem:[#allocation13 + $0x88] sm:$0xff]
    %v842 = vld [vmem:[#allocation13 + $0x90] sm:$0xff]
    %v843 = vld [vmem:[#allocation13 + $0x98] sm:$0xff]
    %v844 = vld [vmem:[#allocation13 + $0xa0] sm:$0xff]
    %v845 = vld [vmem:[#allocation13 + $0xa8] sm:$0xff]
    %v846 = vld [vmem:[#allocation13 + $0xb0] sm:$0xff]
    %v847 = vld [vmem:[#allocation13 + $0xb8] sm:$0xff]
    %v848 = vld [vmem:[#allocation13 + $0xc0] sm:$0xff]
    %v849 = vld [vmem:[#allocation13 + $0xc8] sm:$0xff]
    %v850 = vld [vmem:[#allocation13 + $0xd0] sm:$0xff]
    %v851 = vld [vmem:[#allocation13 + $0xd8] sm:$0xff]
    %v852 = vld [vmem:[#allocation13 + $0xe0] sm:$0xff]
    %v853 = vld [vmem:[#allocation13 + $0xe8] sm:$0xff]
    %v854 = vld [vmem:[#allocation13 + $0xf0] sm:$0xff]
    %v855 = vld [vmem:[#allocation13 + $0xf8] sm:$0xff]
    %v856 = vld [vmem:[#allocation13 + $0x100] sm:$0xff]
    %v857 = vld [vmem:[#allocation13 + $0x108] sm:$0xff]
    %v858 = vld [vmem:[#allocation13 + $0x110] sm:$0xff]
    %v859 = vld [vmem:[#allocation13 + $0x118] sm:$0xff]
    %v860 = vld [vmem:[#allocation13 + $0x120] sm:$0xff]
    %v861 = vld [vmem:[#allocation13 + $0x128] sm:$0xff]
    %v862 = vld [vmem:[#allocation13 + $0x130] sm:$0xff]
    %v863 = vld [vmem:[#allocation13 + $0x138] sm:$0xff]
    %v864 = vld [vmem:[#allocation13 + $0x140] sm:$0xff]
    %v865 = vld [vmem:[#allocation13 + $0x148] sm:$0xff]
    %v866 = vld [vmem:[#allocation13 + $0x150] sm:$0xff]
    %v867 = vld [vmem:[#allocation13 + $0x158] sm:$0xff]
    %v868 = vld [vmem:[#allocation13 + $0x160] sm:$0xff]
    %v869 = vld [vmem:[#allocation13 + $0x168] sm:$0xff]
    %v870 = vld [vmem:[#allocation13 + $0x170] sm:$0xff]
    %v871 = vld [vmem:[#allocation13 + $0x178] sm:$0xff]
    %v872 = vld [vmem:[#allocation13 + $0x180] sm:$0xff]
    %v873 = vld [vmem:[#allocation13 + $0x188] sm:$0xff]
    %v874 = vld [vmem:[#allocation13 + $0x190] sm:$0xff]
    %v875 = vld [vmem:[#allocation13 + $0x198] sm:$0xff]
    %v876 = vld [vmem:[#allocation13 + $0x1a0] sm:$0xff]
    %v877 = vld [vmem:[#allocation13 + $0x1a8] sm:$0xff]
    %v878 = vld [vmem:[#allocation13 + $0x1b0] sm:$0xff]
    %v879 = vld [vmem:[#allocation13 + $0x1b8] sm:$0xff]
    %v880 = vld [vmem:[#allocation13 + $0x1c0] sm:$0xff]
    %v881 = vld [vmem:[#allocation13 + $0x1c8] sm:$0xff]
    %v882 = vld [vmem:[#allocation13 + $0x1d0] sm:$0xff]
    %v883 = vld [vmem:[#allocation13 + $0x1d8] sm:$0xff]
    %v884 = vld [vmem:[#allocation13 + $0x1e0] sm:$0xff]
    %v885 = vld [vmem:[#allocation13 + $0x1e8] sm:$0xff]
    %v886 = vld [vmem:[#allocation13 + $0x1f0] sm:$0xff]
    %v887 = vld [vmem:[#allocation13 + $0x1f8] sm:$0xff]
    %v888 = vld [vmem:[%s13] sm:$0x3]
    %v890 = vlaneseq
    %v891 = vshrl.u32 %v890, 7
    %v892 = vsub.s32 0, %v891
    %v893 = vrot.slane %v888, %v892
    %v894 = vlaneseq
    %v895 = vshrl.u32 %v894, 7
    %v896 = vsub.s32 1, %v895
    %v897 = vrot.slane %v888, %v896
    %900 = vmatprep.subr.mxu0 %v855
    %901 = vmatpush1.msra.mxu0 %v854
    %902 = vmatprep.subr.mxu0 %v853
    %903 = vmatpush1.msra.mxu0 %v852
    %904 = vmatprep.subr.mxu0 %v851
    %905 = vmatpush1.msra.mxu0 %v850
    %906 = vmatprep.subr.mxu0 %v849
    %907 = vmatpush1.msra.mxu0 %v848
    %908 = vmatprep.subr.mxu0 %v847
    %909 = vmatpush1.msra.mxu0 %v846
    %910 = vmatprep.subr.mxu0 %v845
    %911 = vmatpush1.msra.mxu0 %v844
    %912 = vmatprep.subr.mxu0 %v843
    %913 = vmatpush1.msra.mxu0 %v842
    %914 = vmatprep.subr.mxu0 %v841
    %915 = vmatpush1.msra.mxu0 %v840
    %916 = vmatprep.subr.mxu0 %v839
    %917 = vmatpush1.msra.mxu0 %v838
    %918 = vmatprep.subr.mxu0 %v837
    %919 = vmatpush1.msra.mxu0 %v836
    %920 = vmatprep.subr.mxu0 %v835
    %921 = vmatpush1.msra.mxu0 %v834
    %922 = vmatprep.subr.mxu0 %v833
    %923 = vmatpush1.msra.mxu0 %v832
    %924 = vmatprep.subr.mxu0 %v831
    %925 = vmatpush1.msra.mxu0 %v830
    %926 = vmatprep.subr.mxu0 %v829
    %927 = vmatpush1.msra.mxu0 %v828
    %928 = vmatprep.subr.mxu0 %v827
    %929 = vmatpush1.msra.mxu0 %v826
    %930 = vmatprep.subr.mxu0 %v825
    %931 = vmatpush1.msra.mxu0 %v824
    %932 = vmatprep.subr.mxu0 %v887
    %933 = vmatpush2.msra.mxu0 %v886
    %934 = vmatprep.subr.mxu0 %v885
    %935 = vmatpush2.msra.mxu0 %v884
    %936 = vmatprep.subr.mxu0 %v883
    %937 = vmatpush2.msra.mxu0 %v882
    %938 = vmatprep.subr.mxu0 %v881
    %939 = vmatpush2.msra.mxu0 %v880
    %940 = vmatprep.subr.mxu0 %v879
    %941 = vmatpush2.msra.mxu0 %v878
    %942 = vmatprep.subr.mxu0 %v877
    %943 = vmatpush2.msra.mxu0 %v876
    %944 = vmatprep.subr.mxu0 %v875
    %945 = vmatpush2.msra.mxu0 %v874
    %946 = vmatprep.subr.mxu0 %v873
    %947 = vmatpush2.msra.mxu0 %v872
    %948 = vmatprep.subr.mxu0 %v871
    %949 = vmatpush2.msra.mxu0 %v870
    %950 = vmatprep.subr.mxu0 %v869
    %951 = vmatpush2.msra.mxu0 %v868
    %952 = vmatprep.subr.mxu0 %v867
    %953 = vmatpush2.msra.mxu0 %v866
    %954 = vmatprep.subr.mxu0 %v865
    %955 = vmatpush2.msra.mxu0 %v864
    %956 = vmatprep.subr.mxu0 %v863
    %957 = vmatpush2.msra.mxu0 %v862
    %958 = vmatprep.subr.mxu0 %v861
    %959 = vmatpush2.msra.mxu0 %v860
    %960 = vmatprep.subr.mxu0 %v859
    %961 = vmatpush2.msra.mxu0 %v858
    %962 = vmatprep.subr.mxu0 %v857
    %963 = vmatpush2.msra.mxu0 %v856
    %964 = vmatprep.mubr.f32.mxu0 %v823
    %965 = vmatmul.mubr.f32.gmra.mxu0 %v822
    %v966 = vpop.f32.mrf.mxu0
    %v967 = vadd.f32 %v893, %v966
    %v968 = vpop.f32.mrf.mxu0
    %v969 = vadd.f32 %v897, %v968
    %970 = vdwg.mxu0
    %v971 = vmax.f32 %v967, 0.0
    %v972 = vmax.f32 %v969, 0.0
    %v973 = vld [vmem:[%s14] sm:$0x3]
    %v975 = vlaneseq
    %v976 = vshrl.u32 %v975, 7
    %v977 = vsub.s32 0, %v976
    %v978 = vrot.slane %v973, %v977
    %v979 = vlaneseq
    %v980 = vshrl.u32 %v979, 7
    %v981 = vsub.s32 1, %v980
    %v982 = vrot.slane %v973, %v981
    %v985 = vmul.f32 %v971, %v978
    %v986 = vmul.f32 %v972, %v982
    %v987 = vadd.f32 %v985, %v986
    %988 = vadd.xlane.f32.xlu0 %v987
    %v989 = vpop.xlane.xlu0 %988
    %v990 = vld [vmem:[#allocation3] sm:$0x1]
    %v992 = vlaneseq
    %v993 = vshrl.u32 %v992, 7
    %v994 = vsub.s32 0, %v993
    %v995 = vrot.slane %v990, %v994
    %v997 = vadd.f32 %v989, %v995
    %vm998 = vcmask 7168
    %999 = vst.msk [vmem:[#allocation15] sm:$0xff] %vm998, %v672
    %1001 = vrot.lane.b32.xlu0 %v997, 1
    %v1002 = vpop.permute.xlu0 %1001
    %vm1004 = vcmask 15368
    %1005 = vst.msk [vmem:[#allocation15] sm:$0xff] %vm1004, %v1002
    // Predicated region
    $region90: #{tpu_custom_call.1} parent=1 // pred_check
      _
    $region91: #{tpu_custom_call.1} parent=1 // pred_check_branch
      %1007 = sbr.rel (0) target = $region93
    $region92: #{tpu_custom_call.1} parent=1 // pred_region
      %s1009 = ssub.s32 128, 32
      %1010 = vsyncadd [#allocation6], %s1009
      %s1011 = sshll.u32 [#allocation15], 4
      %s1012 = int_to_ptr.vmem [resolvable:$true] %s1011
      %1017 = dma.vmem_to_hbm [thread:$0]  %s1012, 32, %s16, [#allocation6], 32, 32, 2
    $region93: #{tpu_custom_call.1} parent=1 // pred_fallthru
      _
    // Predicated region
    $region94: #{tpu_custom_call.1} parent=1 // pred_check
      _
    $region95: #{tpu_custom_call.1} parent=1 // pred_check_branch
      %1019 = sbr.rel (0) target = $region97
    $region96: #{tpu_custom_call.1} parent=1 // pred_region
      %1020 = dma.done [#allocation6], 128
    $region97: #{tpu_custom_call.1} parent=1 // pred_fallthru
      _
    %1021 = vsyncpa [#allocation5], 1
    %1022 = vsyncpa [#allocation8], 1
    %1023 = vsyncpa [#allocation11], 1
    %1024 = vsyncpa [#allocation14], 1
    %1025 = vsyncpa [#allocation6], 1

</llo_original>
